<compile_context>
chip_gen: v6e
topology: v6e:2x2x1
jax: 0.10.0
libtpu: 0.0.40
codegen_flags: <defaults>
</compile_context>

<pallas_src>
import math

import jax
import jax.numpy as jnp
from jax import lax
from jax.experimental import pallas as pl
from jax.experimental.pallas import tpu as pltpu

_TWO_PI = 2.0 * math.pi
_LANES = 128
_SUBLANES = 8


def _round_down(x, m):
    return (x // m) * m


def _device_kind():
    try:
        return jax.devices()[0].device_kind.lower()
    except Exception:
        return ""


def _cyl_loss_kernel(o_ref, t_ref, out_ref, acc_ref):
    """Accumulate cylindrical distances of one (block_rows, 128) interleaved block."""
    step = pl.program_id(1)

    @pl.when(step == 0)
    def _():
        acc_ref[...] = jnp.zeros_like(acc_ref)

    two_pi = jnp.float32(_TWO_PI)
    inv_two_pi = jnp.float32(1.0 / _TWO_PI)

    # Interleaved stream: even lanes carry eta, odd lanes carry phi.
    d = o_ref[...].astype(jnp.float32) - t_ref[...].astype(jnp.float32)

    # phi branch: wrapped angular distance.  mul+floor+fnma (no divide); the
    # floor-mod is symmetric under min(m, 2*pi - m), so torch's abs is not
    # needed.  eta branch keeps the raw diff (it is squared right away).
    m = d - jnp.floor(d * inv_two_pi) * two_pi
    w = jnp.minimum(m, two_pi - m)

    lane = lax.broadcasted_iota(jnp.int32, (1, _LANES), 1)   # tiny (1, 128) iota
    is_phi = jnp.bitwise_and(lane, 1) == 1                   # odd lanes

    val = jnp.where(is_phi, w, d)
    sq = val * val
    # rolled[j] = sq[j-1]  =>  odd lane 2k+1 holds eta_k^2 + phi_k^2.
    pair = sq + pltpu.roll(sq, shift=1, axis=1)

    # Lane packing: keep the top half's valid (odd) lanes and roll the bottom
    # half's valid lanes onto the even lanes, so every lane of `packed` holds a
    # real pair -> one sqrt and one accumulate add per point (XLU roll is free).
    half = pair.shape[0] // 2
    bottom = pltpu.roll(pair[half:, :], shift=_LANES - 1, axis=1)   # == shift -1
    packed = jnp.where(is_phi, pair[:half, :], bottom)
    dist = jnp.sqrt(packed)                                   # (half, 128)

    # Reduce 8-row slabs (pure vreg adds) into the single-vreg accumulator.
    slabs = dist.reshape(half // _SUBLANES, _SUBLANES, _LANES)
    acc_ref[...] += jnp.sum(slabs, axis=0)

    @pl.when(step == pl.num_programs(1) - 1)
    def _():
        out_ref[0, :, :] = jnp.sum(acc_ref[...], keepdims=True)


def cylindrical_loss(output, target, *, max_block_rows=None, num_partitions=None):
    """Pallas implementation of CylindricalLoss.forward.  Returns a scalar f32."""
    o = jnp.asarray(output)
    t = jnp.asarray(target)
    # bf16 inputs are streamed at half the HBM bytes and upcast in-kernel.
    if not (o.dtype == t.dtype and o.dtype in (jnp.float32, jnp.bfloat16)):
        o = o.astype(jnp.float32)
        t = t.astype(jnp.float32)
    o = o.reshape(-1)
    t = t.reshape(-1)
    total = o.shape[0]
    if total % 2 != 0:
        raise ValueError("flat element count must be even (view(-1, 2)).")
    n_points = total // 2

    kind = _device_kind()
    if num_partitions is None:
        num_partitions = 2 if "v7" in kind else 1     # 2 TensorCores only on v7x
    if max_block_rows is None:
        max_block_rows = 8192 if "v7" in kind else 4096
    max_block_rows = max(16, _round_down(int(max_block_rows), 16))

    # Only lane-ragged sizes pay a (<=127 zero) pad; zeros add sqrt(0)=0 to the
    # sum and the divisor below is the true point count, so they are harmless.
    rem = (-total) % _LANES
    if rem:
        o = jnp.pad(o, (0, rem))
        t = jnp.pad(t, (0, rem))
    rows = (total + rem) // _LANES
    o2 = o.reshape(rows, _LANES)     # free reshape, no transpose / deinterleave
    t2 = t.reshape(rows, _LANES)

    # Cover the largest block-aligned prefix of rows with the kernel (via the
    # index_map -- no prefix copy); leftover rows go to the tiny jnp tail.
    n_part = max(1, int(num_partitions))
    bpp = pl.cdiv(rows, n_part * max_block_rows)            # blocks per partition
    block_rows = min(max_block_rows, _round_down(rows // (n_part * bpp), 16))
    if block_rows == 0 and n_part > 1:                      # too few rows to split
        n_part = 1
        bpp = pl.cdiv(rows, max_block_rows)
        block_rows = min(max_block_rows, _round_down(rows // bpp, 16))
    rows_main = n_part * bpp * block_rows

    ksum = jnp.float32(0.0)
    if rows_main > 0:
        in_map = lambda c, i: (c * bpp + i, 0)
        partial = pl.pallas_call(
            _cyl_loss_kernel,
            out_shape=jax.ShapeDtypeStruct((n_part, 1, 1), jnp.float32),
            grid_spec=pltpu.PrefetchScalarGridSpec(
                num_scalar_prefetch=0,
                grid=(n_part, bpp),
                in_specs=[
                    pl.BlockSpec((block_rows, _LANES), in_map),
                    pl.BlockSpec((block_rows, _LANES), in_map),
                ],
                out_specs=pl.BlockSpec((1, 1, 1), lambda c, i: (c, 0, 0)),
                scratch_shapes=[pltpu.VMEM((_SUBLANES, _LANES), jnp.float32)],
            ),
            compiler_params=pltpu.CompilerParams(
                dimension_semantics=("parallel", "arbitrary"),
            ),
        )(o2, t2)
        ksum = jnp.sum(partial)

    tail_sum = jnp.float32(0.0)
    if rows_main < rows:
        # Small leftover (< one block per partition, plus the <=127 pad zeros).
        ot = o2[rows_main:].reshape(-1, 2).astype(jnp.float32)
        tt = t2[rows_main:].reshape(-1, 2).astype(jnp.float32)
        eta = ot[:, 0] - tt[:, 0]
        dphi = jnp.abs(ot[:, 1] - tt[:, 1])
        two_pi = jnp.float32(_TWO_PI)
        mm = jnp.mod(dphi, two_pi)           # == torch.fmod for non-negative args
        ww = jnp.minimum(mm, two_pi - mm)
        tail_sum = jnp.sum(jnp.sqrt(eta * eta + ww * ww))

    return (ksum + tail_sum) / jnp.float32(n_points)


def _reference(output, target):
    o = jnp.asarray(output, jnp.float32).reshape(-1, 2)
    t = jnp.asarray(target, jnp.float32).reshape(-1, 2)
    eta = jnp.abs(o[:, 0] - t[:, 0])
    phi = jnp.abs(o[:, 1] - t[:, 1])
    two_pi = jnp.float32(_TWO_PI)
    phi = jnp.mod(phi, two_pi)               # == torch.fmod for non-negative args
    phi = jnp.minimum(phi, two_pi - phi)
    return jnp.mean(jnp.sqrt(eta * eta + phi * phi))


if __name__ == "__main__":
    key = jax.random.PRNGKey(0)
    keys = jax.random.split(key, 8)

    def check(out, tgt, **kw):
        got = jax.block_until_ready(cylindrical_loss(out, tgt, **kw))
        want = jax.block_until_ready(_reference(out, tgt))
        assert jnp.allclose(got, want, rtol=1e-5, atol=1e-5), (got, want, kw)

    # 1) Small NCHW-like shape, lane-aligned (2*4*16*16 = 2048 elements).
    a1 = jax.random.normal(keys[0], (2, 4, 16, 16), jnp.float32) * 4.0
    b1 = jax.random.normal(keys[1], (2, 4, 16, 16), jnp.float32) * 4.0
    check(a1, b1)

    # 2) Ragged element count (3*5*11*14 = 2310): exercises the <=127-element
    #    zero pad plus the kernel-prefix + jnp-tail split.
    a2 = jax.random.normal(keys[2], (3, 5, 11, 14), jnp.float32) * 4.0
    b2 = jax.random.normal(keys[3], (3, 5, 11, 14), jnp.float32) * 4.0
    check(a2, b2)

    # 3) Forced small blocks + 2-way partition: multi-step accumulation and the
    #    "parallel" partition path (v7x megacore layout) on any chip.
    a3 = jax.random.normal(keys[4], (2, 4, 32, 32), jnp.float32) * 4.0
    b3 = jax.random.normal(keys[5], (2, 4, 32, 32), jnp.float32) * 4.0
    check(a3, b3, max_block_rows=16, num_partitions=2)

    # 4) bf16 inputs: half the HBM bytes read, upcast to f32 inside the kernel.
    a4 = (jax.random.normal(keys[6], (2, 4, 16, 16), jnp.float32) * 4.0).astype(jnp.bfloat16)
    b4 = (jax.random.normal(keys[7], (2, 4, 16, 16), jnp.float32) * 4.0).astype(jnp.bfloat16)
    check(a4, b4)

    print("KERNEL_OK")
</pallas_src>

<mosaic_0001>
module attributes {stable_mosaic.version = 11 : i64} {
  func.func @_cyl_loss_kernel(%arg0: i32, %arg1: i32, %arg2: memref<16x128xf32, #tpu.memory_space<vmem>>, %arg3: memref<16x128xf32, #tpu.memory_space<vmem>>, %arg4: memref<1x1x1xf32, #tpu.memory_space<vmem>>, %arg5: memref<8x128xf32, #tpu.memory_space<vmem>>) attributes {dimension_semantics = [#tpu.dimension_semantics<parallel>, #tpu.dimension_semantics<arbitrary>], iteration_bounds = array<i64: 1, 1>, scalar_prefetch = 0 : i64, scratch_operands = 1 : i64, tpu.core_type = #tpu.core_type<tc>, window_params = [{transform_indices = @transform_0, window_bounds = array<i64: 16, 128>}, {transform_indices = @transform_1, window_bounds = array<i64: 16, 128>}, {transform_indices = @transform_2, window_bounds = array<i64: 1, 1, 1>}]} {
    %c0_i32 = arith.constant 0 : i32
    %0 = arith.cmpi eq, %arg1, %c0_i32 : i32
    %1 = arith.extui %0 : i1 to i32
    %c0_i32_0 = arith.constant 0 : i32
    %2 = arith.cmpi ne, %1, %c0_i32_0 : i32
    scf.if %2 {
      %cst_15 = arith.constant 0.000000e+00 : f32
      %41 = vector.broadcast %cst_15 : f32 to vector<8x128xf32>
      %c0_16 = arith.constant 0 : index
      %c0_17 = arith.constant 0 : index
      %42 = vector.load %arg5[%c0_16, %c0_17] : memref<8x128xf32, #tpu.memory_space<vmem>>, vector<8x128xf32>
      tpu.vector_store %arg5[%c0_16, %c0_17], %41 {strides = array<i32>} : memref<8x128xf32, #tpu.memory_space<vmem>>, vector<8x128xf32>,
    } else {
    }
    %c0 = arith.constant 0 : index
    %c0_1 = arith.constant 0 : index
    %3 = vector.load %arg2[%c0, %c0_1] : memref<16x128xf32, #tpu.memory_space<vmem>>, vector<16x128xf32>
    %c0_2 = arith.constant 0 : index
    %c0_3 = arith.constant 0 : index
    %4 = vector.load %arg3[%c0_2, %c0_3] : memref<16x128xf32, #tpu.memory_space<vmem>>, vector<16x128xf32>
    %5 = arith.subf %3, %4 : vector<16x128xf32>
    %cst = arith.constant 0.159154937 : f32
    %6 = vector.broadcast %cst : f32 to vector<16x128xf32>
    %7 = arith.mulf %5, %6 : vector<16x128xf32>
    %8 = math.floor %7 : vector<16x128xf32>
    %cst_4 = arith.constant 6.28318548 : f32
    %9 = vector.broadcast %cst_4 : f32 to vector<16x128xf32>
    %10 = arith.mulf %8, %9 : vector<16x128xf32>
    %11 = arith.subf %5, %10 : vector<16x128xf32>
    %cst_5 = arith.constant 6.28318548 : f32
    %12 = vector.broadcast %cst_5 : f32 to vector<16x128xf32>
    %13 = arith.subf %12, %11 : vector<16x128xf32>
    %14 = arith.minimumf %11, %13 : vector<16x128xf32>
    %15 = tpu.iota {dimensions = array<i32: 1>} : vector<1x128xi32>
    %c1_i32 = arith.constant 1 : i32
    %16 = vector.broadcast %c1_i32 : i32 to vector<1x128xi32>
    %17 = arith.andi %15, %16 : vector<1x128xi32>
    %c1_i32_6 = arith.constant 1 : i32
    %18 = vector.broadcast %c1_i32_6 : i32 to vector<1x128xi32>
    %19 = arith.cmpi eq, %17, %18 : vector<1x128xi32>
    %20 = vector.shape_cast %19 : vector<1x128xi1> to vector<1x128xi1>
    %21 = vector.broadcast %20 : vector<1x128xi1> to vector<16x128xi1>
    %22 = arith.select %21, %14, %5 : vector<16x128xi1>, vector<16x128xf32>
    %23 = arith.mulf %22, %22 : vector<16x128xf32>
    %c1_i32_7 = arith.constant 1 : i32
    %24 = tpu.dynamic_rotate %23 by %c1_i32_7 dim 1 : vector<16x128xf32>, i32 -> vector<16x128xf32>
    %25 = arith.addf %23, %24 : vector<16x128xf32>
    %26 = vector.extract_strided_slice %25 {offsets = [8, 0], sizes = [8, 128], strides = [1, 1]} : vector<16x128xf32> to vector<8x128xf32>
    %c127_i32 = arith.constant 127 : i32
    %27 = tpu.dynamic_rotate %26 by %c127_i32 dim 1 : vector<8x128xf32>, i32 -> vector<8x128xf32>
    %28 = vector.extract_strided_slice %25 {offsets = [0, 0], sizes = [8, 128], strides = [1, 1]} : vector<16x128xf32> to vector<8x128xf32>
    %29 = vector.shape_cast %19 : vector<1x128xi1> to vector<1x128xi1>
    %30 = vector.broadcast %29 : vector<1x128xi1> to vector<8x128xi1>
    %31 = arith.select %30, %28, %27 : vector<8x128xi1>, vector<8x128xf32>
    %32 = math.sqrt %31 : vector<8x128xf32>
    %33 = vector.shape_cast %32 : vector<8x128xf32> to vector<1x8x128xf32>
    %c0_8 = arith.constant 0 : index
    %c0_9 = arith.constant 0 : index
    %34 = vector.load %arg5[%c0_8, %c0_9] : memref<8x128xf32, #tpu.memory_space<vmem>>, vector<8x128xf32>
    %cst_10 = arith.constant dense<0.000000e+00> : vector<8x128xf32>
    %35 = vector.multi_reduction <add>, %33, %cst_10 [0] : vector<1x8x128xf32> to vector<8x128xf32>
    %36 = arith.addf %34, %35 : vector<8x128xf32>
    %c0_11 = arith.constant 0 : index
    %c0_12 = arith.constant 0 : index
    %37 = vector.load %arg5[%c0_11, %c0_12] : memref<8x128xf32, #tpu.memory_space<vmem>>, vector<8x128xf32>
    tpu.vector_store %arg5[%c0_11, %c0_12], %36 {strides = array<i32>} : memref<8x128xf32, #tpu.memory_space<vmem>>, vector<8x128xf32>,
    %c0_i32_13 = arith.constant 0 : i32
    %38 = arith.cmpi eq, %arg1, %c0_i32_13 : i32
    %39 = arith.extui %38 : i1 to i32
    %c0_i32_14 = arith.constant 0 : i32
    %40 = arith.cmpi ne, %39, %c0_i32_14 : i32
    scf.if %40 {
      %c0_15 = arith.constant 0 : index
      %c0_16 = arith.constant 0 : index
      %41 = vector.load %arg5[%c0_15, %c0_16] : memref<8x128xf32, #tpu.memory_space<vmem>>, vector<8x128xf32>
      %42 = vector.shape_cast %41 : vector<8x128xf32> to vector<1x8x128xf32>
      %cst_17 = arith.constant dense<0.000000e+00> : vector<1xf32>
      %43 = vector.multi_reduction <add>, %42, %cst_17 [1, 2] : vector<1x8x128xf32> to vector<1xf32>
      %44 = vector.shape_cast %43 : vector<1xf32> to vector<1x1x1xf32>
      %45 = vector.extract %44[0, 0, 0] : f32 from vector<1x1x1xf32>
      %46 = vector.broadcast %45 : f32 to vector<1x1xf32>
      %c0_18 = arith.constant 0 : index
      %c0_19 = arith.constant 0 : index
      %c0_20 = arith.constant 0 : index
      %47 = vector.load %arg4[%c0_18, %c0_19, %c0_20] : memref<1x1x1xf32, #tpu.memory_space<vmem>>, vector<1x1x1xf32>
      %48 = vector.shape_cast %47 : vector<1x1x1xf32> to vector<1x1xf32>
      %49 = vector.shape_cast %46 : vector<1x1xf32> to vector<1x1x1xf32>
      tpu.vector_store %arg4[%c0_18, %c0_19, %c0_20], %49 {strides = array<i32>} : memref<1x1x1xf32, #tpu.memory_space<vmem>>, vector<1x1x1xf32>,
    } else {
    }
    return
  }
  func.func @transform_0(%arg0: i32, %arg1: i32) -> (i32, i32) {
    %c1_i32 = arith.constant 1 : i32
    %0 = arith.muli %arg0, %c1_i32 : i32
    %1 = arith.addi %0, %arg1 : i32
    %c0_i32 = arith.constant 0 : i32
    %c0_i32_0 = arith.constant 0 : i32
    return %1, %c0_i32 : i32, i32
  }
  func.func @transform_1(%arg0: i32, %arg1: i32) -> (i32, i32) {
    %c1_i32 = arith.constant 1 : i32
    %0 = arith.muli %arg0, %c1_i32 : i32
    %1 = arith.addi %0, %arg1 : i32
    %c0_i32 = arith.constant 0 : i32
    %c0_i32_0 = arith.constant 0 : i32
    return %1, %c0_i32 : i32, i32
  }
  func.func @transform_2(%arg0: i32, %arg1: i32) -> (i32, i32, i32) {
    %c0_i32 = arith.constant 0 : i32
    %c0_i32_0 = arith.constant 0 : i32
    %c0_i32_1 = arith.constant 0 : i32
    return %arg0, %c0_i32, %c0_i32_0 : i32, i32, i32
  }
}

</mosaic_0001>

<llo_original>
// kernel: tpu_custom_call.1
$region0: #{tpu_custom_call.1}
  #allocation0 [shape = 'u32[]', space=smem, size = 0x4, offset = 0x4, fixed_abs, tag = 'smem constant byte address 0x4 - core index']
  #allocation1 [shape = 'u32[144,128]{1,0:T(1,128)}', space=vmem, size = 0x12000, scoped, tag = 'internal scratch']
  #allocation2 [shape = 'f32[8,128]{1,0:T(8,128)}', space=vmem, size = 0x1000, scoped, tag = 'scratch operand']
  %s0 = inlined_call_operand.hbm [shape: f32[16,128], index: 0, kind: input, shape index: {}]
  %s1 = inlined_call_operand.hbm [shape: f32[16,128], index: 1, kind: input, shape index: {}]
  %s2 = inlined_call_operand.hbm [shape: f32[1,1,1], index: 2, kind: output, shape index: {}]
  %s3 = sld [smem:[#allocation0]]
  $region34: #{tpu_custom_call.1} parent=0
    _
  %s5 = ssub.s32 1, %s3
  %s6 = scalar_select 0, %s5, %s3
  $region1: #{tpu_custom_call.1} parent=0
    #allocation3 [shape = 'u8[8192]{0}', space=vmem, size = 0x2000, scoped, tag = 'input window, operand 0, single buffered']
    #allocation4 [shape = 's32[1]{0}', space=sflag, size = 0x4, scoped, tag = 'scoped memory for tpu_custom_call.1']
    #allocation5 [shape = 's32[1]{0}', space=sflag, size = 0x4, scoped, tag = 'scoped memory for tpu_custom_call.1']
    #allocation6 [shape = 'u8[8192]{0}', space=vmem, size = 0x2000, scoped, tag = 'input window, operand 1, single buffered']
    #allocation7 [shape = 's32[1]{0}', space=sflag, size = 0x4, scoped, tag = 'scoped memory for tpu_custom_call.1']
    #allocation8 [shape = 'u8[512]{0}', space=vmem, size = 0x400, scoped, tag = 'output window, operand 0, single buffered']
    %7 = vsyncpa [#allocation4], 0
    %8 = vsyncpa [#allocation7], 0
    %9 = vsyncpa [#allocation5], 0
    // Predicated region
    $region2: #{tpu_custom_call.1} parent=1 // pred_check
      _
    $region3: #{tpu_custom_call.1} parent=1 // pred_check_branch
      %11 = sbr.rel (0) target = $region5
    $region4: #{tpu_custom_call.1} parent=1 // pred_region
      %s12 = sadd.s32 0, 0
      %s13 = smul.u32 2, %s12
      %s15 = ssub.s32 256, 256
      %16 = vsyncadd [#allocation4], %s15
      %s17 = smul.addr %s13, 128
      %s18 = scalar_lea.hbm %s0, %s17
      %s19 = sshll.u32 [#allocation3], 4
      %s20 = int_to_ptr.vmem [resolvable:$true] %s19
      %25 = dma.hbm_to_vmem [thread:$0]  %s18, 256, %s20, [#allocation4], 128, 128, 8
    $region5: #{tpu_custom_call.1} parent=1 // pred_fallthru
      _
    // Predicated region
    $region6: #{tpu_custom_call.1} parent=1 // pred_check
      _
    $region7: #{tpu_custom_call.1} parent=1 // pred_check_branch
      %27 = sbr.rel (0) target = $region9
    $region8: #{tpu_custom_call.1} parent=1 // pred_region
      %s28 = sadd.s32 0, 0
      %s29 = smul.u32 2, %s28
      %s31 = ssub.s32 256, 256
      %32 = vsyncadd [#allocation7], %s31
      %s33 = smul.addr %s29, 128
      %s34 = scalar_lea.hbm %s1, %s33
      %s35 = sshll.u32 [#allocation6], 4
      %s36 = int_to_ptr.vmem [resolvable:$true] %s35
      %41 = dma.hbm_to_vmem [thread:$0]  %s34, 256, %s36, [#allocation7], 128, 128, 8
    $region9: #{tpu_custom_call.1} parent=1 // pred_fallthru
      _
    // Predicated region
    $region10: #{tpu_custom_call.1} parent=1 // pred_check
      _
    $region11: #{tpu_custom_call.1} parent=1 // pred_check_branch
      %43 = sbr.rel (0) target = $region13
    $region12: #{tpu_custom_call.1} parent=1 // pred_region
      %44 = dma.done [#allocation4], 256
    $region13: #{tpu_custom_call.1} parent=1 // pred_fallthru
      _
    // Predicated region
    $region14: #{tpu_custom_call.1} parent=1 // pred_check
      _
    $region15: #{tpu_custom_call.1} parent=1 // pred_check_branch
      %46 = sbr.rel (0) target = $region17
    $region16: #{tpu_custom_call.1} parent=1 // pred_region
      %47 = dma.done [#allocation7], 256
    $region17: #{tpu_custom_call.1} parent=1 // pred_fallthru
      _
    %s48 = sadd.s32 0, 0
    %s49 = smul.u32 2, %s48
    %s50 = sadd.s32 0, 0
    %s51 = smul.u32 2, %s50
    %p52 = scmp.eq.s32.totalorder 0, 0
    // Predicated region
    $region18: #{tpu_custom_call.1} parent=1 // pred_check
      %p53 = pneg %p52
    $region19: #{tpu_custom_call.1} parent=1 // pred_check_branch
      %55 = sbr.rel (%p53) target = $region21
    $region20: #{tpu_custom_call.1} parent=1 // pred_region
      %56 = vst [vmem:[#allocation2] sm:$0xff] 0.0
    $region21: #{tpu_custom_call.1} parent=1 // pred_fallthru
      _
    %v57 = vld [vmem:[#allocation3] sm:$0xff]
    %v58 = vld [vmem:[#allocation3 + $0x8] sm:$0xff]
    %v59 = vld [vmem:[#allocation6] sm:$0xff]
    %v60 = vld [vmem:[#allocation6 + $0x8] sm:$0xff]
    %v61 = vsub.f32 %v57, %v59
    %v62 = vsub.f32 %v58, %v60
    %v63 = vmul.f32 %v61, 0.15915494
    %v64 = vmul.f32 %v62, 0.15915494
    %v65 = vfloor.f32 %v63
    %v66 = vfloor.f32 %v64
    %v67 = vmul.f32 %v65, 6.2831855
    %v68 = vmul.f32 %v66, 6.2831855
    %v69 = vsub.f32 %v61, %v67
    %v70 = vsub.f32 %v62, %v68
    %v71 = vsub.f32 6.2831855, %v69
    %v72 = vsub.f32 6.2831855, %v70
    %v73 = vmin.f32 %v69, %v71
    %v74 = vmin.f32 %v70, %v72
    %v75 = vlaneseq
    %v76 = vand.u32 %v75, 127
    %v77 = vand.u32 %v76, 1
    %vm78 = vcmp.eq.s32.totalorder %v77, 1
    %v79 = vsel %vm78, 1, 0
    %vm80 = vcmp.eq.s32.totalorder %v79, 1
    %v81 = vsel %vm80, %v73, %v61
    %v82 = vsel %vm80, %v74, %v62
    %v83 = vmul.f32 %v81, %v81
    %v84 = vmul.f32 %v82, %v82
    %85 = vrot.lane.b32.xlu0 %v83, 1
    %v86 = vpop.permute.xlu0 %85
    %87 = vrot.lane.b32.xlu0 %v84, 1
    %v88 = vpop.permute.xlu0 %87
    %v89 = vadd.f32 %v83, %v86
    %v90 = vadd.f32 %v84, %v88
    %91 = vrot.lane.b32.xlu0 %v90, 127
    %v92 = vpop.permute.xlu0 %91
    %v93 = vsel %vm80, %v89, %v92
    %v94 = vrsqrt.pop %v93
    %v95 = vmul.f32 %v93, %v94
    %vm96 = vcmp.eq.f32.partialorder %v93, inf
    %v97 = vsel %vm96, %v93, %v95
    %vm98 = vcmp.eq.f32.partialorder %v93, 0.0
    %v99 = vand.u32 %v93, 2147483648
    %v100 = vsel %vm98, %v99, %v97
    %v101 = vld [vmem:[#allocation2] sm:$0xff]
    %v102 = vadd.f32 %v100, 0.0
    %v103 = vadd.f32 %v101, %v102
    %104 = vst [vmem:[#allocation2] sm:$0xff] %v103
    // Predicated region
    $region22: #{tpu_custom_call.1} parent=1 // pred_check
      %p105 = pneg %p52
    $region23: #{tpu_custom_call.1} parent=1 // pred_check_branch
      %107 = sbr.rel (%p105) target = $region25
    $region24: #{tpu_custom_call.1} parent=1 // pred_region
      %v108 = vld [vmem:[#allocation2] sm:$0xff]
      %109 = vadd.xlane.f32.xlu0 %v108
      %v110 = vpop.xlane.xlu0 %109
      %v111 = vrot.slane %v110, 4
      %v112 = vadd.f32 %v110, %v111
      %v113 = vrot.slane %v112, 2
      %v114 = vadd.f32 %v112, %v113
      %v115 = vrot.slane %v114, 1
      %v116 = vadd.f32 %v114, %v115
      %s117 = vtos %v116
      %v118 = vstv %s117
      %vm119 = vcmask 0
      %120 = vst.msk [vmem:[#allocation8] sm:$0x1] %vm119, %v118
    $region25: #{tpu_custom_call.1} parent=1 // pred_fallthru
      _
    // Predicated region
    $region26: #{tpu_custom_call.1} parent=1 // pred_check
      _
    $region27: #{tpu_custom_call.1} parent=1 // pred_check_branch
      %122 = sbr.rel (0) target = $region29
    $region28: #{tpu_custom_call.1} parent=1 // pred_region
      %s124 = ssub.s32 16, 16
      %125 = vsyncadd [#allocation5], %s124
      %s127 = sshll.u32 [#allocation8], 4
      %s128 = int_to_ptr.vmem [resolvable:$true] %s127
      %130 = dma.vmem_to_hbm [thread:$0]  %s128, 16, %s2, [#allocation5]
    $region29: #{tpu_custom_call.1} parent=1 // pred_fallthru
      _
    // Predicated region
    $region30: #{tpu_custom_call.1} parent=1 // pred_check
      _
    $region31: #{tpu_custom_call.1} parent=1 // pred_check_branch
      %132 = sbr.rel (0) target = $region33
    $region32: #{tpu_custom_call.1} parent=1 // pred_region
      %133 = dma.done [#allocation5], 16
    $region33: #{tpu_custom_call.1} parent=1 // pred_fallthru
      _
    %134 = vsyncpa [#allocation4], 1
    %135 = vsyncpa [#allocation7], 1
    %136 = vsyncpa [#allocation5], 1

</llo_original>
